<compile_context>
chip_gen: v7x
topology: tpu7x:2x2x1
jax: 0.10.0
libtpu: 0.0.40
codegen_flags: <defaults>
</compile_context>

<pallas_src>
import functools

import jax
import jax.numpy as jnp
from jax.experimental import pallas as pl
from jax.experimental.pallas import tpu as pltpu


def _patch_embed_kernel(x_ref, w_ref, b_ref, o_ref):
    # x_ref: (1, th, c_in)                     rows of one batch element
    # w_ref: (c_in, W_total)                   block-diagonal conv weight (pad rows dropped)
    # b_ref: (1, W_total)                      bias tiled per patch
    # o_ref: (1, num_patch, th, patch_size)    final (permuted) output layout
    num_patch = o_ref.shape[1]
    ps = o_ref.shape[3]

    # One lane-dense MXU matmul covering every patch at once, f32 accumulate.
    acc = jnp.dot(x_ref[0], w_ref[...], preferred_element_type=jnp.float32)
    acc = (acc + b_ref[...]).astype(o_ref.dtype)          # (th, W_total)

    # Scatter per-patch column groups into the permuted output block.  This is
    # the fused permute(0, 3, 2, 1): no extra HBM pass after the kernel.
    for p in range(num_patch):                 # static unroll (num_patch small)
        o_ref[0, p, :, :] = acc[:, p * ps:(p + 1) * ps]


@functools.partial(jax.jit, static_argnums=(3, 4))
def patch_embedding(x, weight, bias, patch_size, num_patch):
    """x: (B, H, c_in); weight: (patch_size, 1, 1, patch_size) (PyTorch conv
    layout (oc, ic, kh, kw)); bias: (patch_size,).
    Returns (B, num_patch, H, patch_size)."""
    B, H, c_in = x.shape
    W_total = patch_size * num_patch
    assert W_total >= c_in, "ZeroPad2d amount must be non-negative"

    # Conv weight (oc, 1, 1, k) -> per-patch matmul weight (k, oc).
    w_mat = weight.reshape(patch_size, patch_size).T
    # Block-diagonal weight over all patches, truncated to the first c_in rows.
    # Truncation == ZeroPad2d (the zero-padded input columns would only hit
    # the dropped rows).
    w_bd = jnp.kron(jnp.eye(num_patch, dtype=w_mat.dtype), w_mat)[:c_in]  # (c_in, W_total)
    b_tiled = jnp.tile(bias, num_patch).reshape(1, W_total)

    # Row tile over H: as large as possible (target 512) while the
    # double-buffered, lane-padded blocks stay well inside the default scoped
    # VMEM (32 MiB on v6e/v7x, 16 MiB on v5e -> budget 24 MiB with headroom).
    def _vmem_bytes(t):
        x_b = 2 * t * max(c_in, 128) * 4                        # double-buffered input
        o_b = 2 * num_patch * t * max(patch_size, 128) * 4      # lane-padded output
        w_b = 2 * (c_in * max(W_total, 128) + max(W_total, 128)) * 4
        return x_b + o_b + w_b

    th = min(H, 512)
    while th > 8 and _vmem_bytes(th) > (24 << 20):
        th //= 2
    if th != H:
        th = max(8, (th // 8) * 8)   # block second-minor dim: multiple of 8 or == H

    grid = (B, pl.cdiv(H, th))       # cdiv grid; boundary H-tile masked by Pallas

    out = pl.pallas_call(
        _patch_embed_kernel,
        out_shape=jax.ShapeDtypeStruct((B, num_patch, H, patch_size), x.dtype),
        grid=grid,
        in_specs=[
            pl.BlockSpec((1, th, c_in), lambda b, h: (b, h, 0)),
            pl.BlockSpec((c_in, W_total), lambda b, h: (0, 0)),
            pl.BlockSpec((1, W_total), lambda b, h: (0, 0)),
        ],
        out_specs=pl.BlockSpec((1, num_patch, th, patch_size),
                               lambda b, h: (b, 0, h, 0)),
        compiler_params=pltpu.CompilerParams(
            dimension_semantics=("parallel", "parallel")),
    )(x, w_bd, b_tiled)
    return out


if __name__ == "__main__":
    # small, module-consistent shapes
    B, H = 2, 16
    c_in = 28
    patch_size = 8
    num_patch = 4  # patch_size * num_patch = 32 >= c_in, pad = 4

    key = jax.random.PRNGKey(0)
    kx, kw, kb = jax.random.split(key, 3)
    x = jax.random.normal(kx, (B, H, c_in), dtype=jnp.float32)
    # deterministic synthetic parameters (PyTorch conv weight layout (oc, ic, kh, kw))
    weight = 0.1 * jax.random.normal(kw, (patch_size, 1, 1, patch_size), dtype=jnp.float32)
    bias = 0.1 * jax.random.normal(kb, (patch_size,), dtype=jnp.float32)

    out = patch_embedding(x, weight, bias, patch_size, num_patch)
    out = jax.block_until_ready(out)
    assert out.shape == (B, num_patch, H, patch_size), out.shape

    # pure-JAX reference of the PyTorch forward
    x_pad = jnp.pad(x, ((0, 0), (0, 0), (0, patch_size * num_patch - c_in)))
    xr = x_pad.reshape(B, H, num_patch, patch_size)
    ref = jnp.einsum("bhpk,ok->bpho", xr, weight.reshape(patch_size, patch_size),
                     precision=jax.lax.Precision.HIGHEST) + bias
    assert jnp.allclose(out, ref, atol=1e-5, rtol=1e-5)

    print("KERNEL_OK")
</pallas_src>

<mosaic_0001>
module attributes {stable_mosaic.version = 11 : i64} {
  func.func @_patch_embed_kernel(%arg0: i32, %arg1: i32, %arg2: memref<1x16x28xf32, #tpu.memory_space<vmem>>, %arg3: memref<28x32xf32, #tpu.memory_space<vmem>>, %arg4: memref<1x32xf32, #tpu.memory_space<vmem>>, %arg5: memref<1x4x16x8xf32, #tpu.memory_space<vmem>>) attributes {dimension_semantics = [#tpu.dimension_semantics<parallel>, #tpu.dimension_semantics<parallel>], iteration_bounds = array<i64: 2, 1>, scalar_prefetch = 0 : i64, scratch_operands = 0 : i64, tpu.core_type = #tpu.core_type<tc>, window_params = [{transform_indices = @transform_0, window_bounds = array<i64: 1, 16, 28>}, {pipeline_mode = #tpu.pipeline_mode<synchronous>, transform_indices = @transform_1, window_bounds = array<i64: 28, 32>}, {pipeline_mode = #tpu.pipeline_mode<synchronous>, transform_indices = @transform_2, window_bounds = array<i64: 1, 32>}, {transform_indices = @transform_3, window_bounds = array<i64: 1, 4, 16, 8>}]} {
    %c0 = arith.constant 0 : index
    %c0_0 = arith.constant 0 : index
    %c0_1 = arith.constant 0 : index
    %0 = vector.load %arg2[%c0, %c0_0, %c0_1] : memref<1x16x28xf32, #tpu.memory_space<vmem>>, vector<1x16x28xf32>
    %1 = vector.shape_cast %0 : vector<1x16x28xf32> to vector<16x28xf32>
    %c0_2 = arith.constant 0 : index
    %c0_3 = arith.constant 0 : index
    %2 = vector.load %arg3[%c0_2, %c0_3] : memref<28x32xf32, #tpu.memory_space<vmem>>, vector<28x32xf32>
    %cst = arith.constant dense<0.000000e+00> : vector<16x32xf32>
    %3 = tpu.matmul %1, %2, %cst {dimension_numbers = #tpu.dot_dimension_numbers<[1], [0], [0], [1], [0, 0, 1, 1], [], []>} : vector<16x28xf32>, vector<28x32xf32>, vector<16x32xf32> -> vector<16x32xf32>
    %c0_4 = arith.constant 0 : index
    %c0_5 = arith.constant 0 : index
    %4 = vector.load %arg4[%c0_4, %c0_5] : memref<1x32xf32, #tpu.memory_space<vmem>>, vector<1x32xf32>
    %5 = vector.broadcast %4 : vector<1x32xf32> to vector<16x32xf32>
    %6 = arith.addf %3, %5 : vector<16x32xf32>
    %7 = vector.extract_strided_slice %6 {offsets = [0, 0], sizes = [16, 8], strides = [1, 1]} : vector<16x32xf32> to vector<16x8xf32>
    %c0_6 = arith.constant 0 : index
    %c0_7 = arith.constant 0 : index
    %c0_8 = arith.constant 0 : index
    %c0_9 = arith.constant 0 : index
    %8 = vector.load %arg5[%c0_6, %c0_7, %c0_8, %c0_9] : memref<1x4x16x8xf32, #tpu.memory_space<vmem>>, vector<1x1x16x8xf32>
    %9 = vector.shape_cast %8 : vector<1x1x16x8xf32> to vector<16x8xf32>
    %10 = vector.shape_cast %7 : vector<16x8xf32> to vector<1x1x16x8xf32>
    tpu.vector_store %arg5[%c0_6, %c0_7, %c0_8, %c0_9], %10 {strides = array<i32>} : memref<1x4x16x8xf32, #tpu.memory_space<vmem>>, vector<1x1x16x8xf32>,
    %11 = vector.extract_strided_slice %6 {offsets = [0, 8], sizes = [16, 8], strides = [1, 1]} : vector<16x32xf32> to vector<16x8xf32>
    %c0_10 = arith.constant 0 : index
    %c1 = arith.constant 1 : index
    %c0_11 = arith.constant 0 : index
    %c0_12 = arith.constant 0 : index
    %12 = vector.load %arg5[%c0_10, %c1, %c0_11, %c0_12] : memref<1x4x16x8xf32, #tpu.memory_space<vmem>>, vector<1x1x16x8xf32>
    %13 = vector.shape_cast %12 : vector<1x1x16x8xf32> to vector<16x8xf32>
    %14 = vector.shape_cast %11 : vector<16x8xf32> to vector<1x1x16x8xf32>
    tpu.vector_store %arg5[%c0_10, %c1, %c0_11, %c0_12], %14 {strides = array<i32>} : memref<1x4x16x8xf32, #tpu.memory_space<vmem>>, vector<1x1x16x8xf32>,
    %15 = vector.extract_strided_slice %6 {offsets = [0, 16], sizes = [16, 8], strides = [1, 1]} : vector<16x32xf32> to vector<16x8xf32>
    %c0_13 = arith.constant 0 : index
    %c2 = arith.constant 2 : index
    %c0_14 = arith.constant 0 : index
    %c0_15 = arith.constant 0 : index
    %16 = vector.load %arg5[%c0_13, %c2, %c0_14, %c0_15] : memref<1x4x16x8xf32, #tpu.memory_space<vmem>>, vector<1x1x16x8xf32>
    %17 = vector.shape_cast %16 : vector<1x1x16x8xf32> to vector<16x8xf32>
    %18 = vector.shape_cast %15 : vector<16x8xf32> to vector<1x1x16x8xf32>
    tpu.vector_store %arg5[%c0_13, %c2, %c0_14, %c0_15], %18 {strides = array<i32>} : memref<1x4x16x8xf32, #tpu.memory_space<vmem>>, vector<1x1x16x8xf32>,
    %19 = vector.extract_strided_slice %6 {offsets = [0, 24], sizes = [16, 8], strides = [1, 1]} : vector<16x32xf32> to vector<16x8xf32>
    %c0_16 = arith.constant 0 : index
    %c3 = arith.constant 3 : index
    %c0_17 = arith.constant 0 : index
    %c0_18 = arith.constant 0 : index
    %20 = vector.load %arg5[%c0_16, %c3, %c0_17, %c0_18] : memref<1x4x16x8xf32, #tpu.memory_space<vmem>>, vector<1x1x16x8xf32>
    %21 = vector.shape_cast %20 : vector<1x1x16x8xf32> to vector<16x8xf32>
    %22 = vector.shape_cast %19 : vector<16x8xf32> to vector<1x1x16x8xf32>
    tpu.vector_store %arg5[%c0_16, %c3, %c0_17, %c0_18], %22 {strides = array<i32>} : memref<1x4x16x8xf32, #tpu.memory_space<vmem>>, vector<1x1x16x8xf32>,
    return
  }
  func.func @transform_0(%arg0: i32, %arg1: i32) -> (i32, i32, i32) {
    %c0_i32 = arith.constant 0 : i32
    %c0_i32_0 = arith.constant 0 : i32
    return %arg0, %arg1, %c0_i32 : i32, i32, i32
  }
  func.func @transform_1(%arg0: i32, %arg1: i32) -> (i32, i32) {
    %c0_i32 = arith.constant 0 : i32
    %c0_i32_0 = arith.constant 0 : i32
    %c0_i32_1 = arith.constant 0 : i32
    return %c0_i32, %c0_i32_0 : i32, i32
  }
  func.func @transform_2(%arg0: i32, %arg1: i32) -> (i32, i32) {
    %c0_i32 = arith.constant 0 : i32
    %c0_i32_0 = arith.constant 0 : i32
    %c0_i32_1 = arith.constant 0 : i32
    return %c0_i32, %c0_i32_0 : i32, i32
  }
  func.func @transform_3(%arg0: i32, %arg1: i32) -> (i32, i32, i32, i32) {
    %c0_i32 = arith.constant 0 : i32
    %c0_i32_0 = arith.constant 0 : i32
    %c0_i32_1 = arith.constant 0 : i32
    return %arg0, %c0_i32, %arg1, %c0_i32_0 : i32, i32, i32, i32
  }
}

</mosaic_0001>

<llo_original>
// kernel: tile.8
$region0: #{tile.8}
  #allocation0 [shape = 's32[1]{0}', space=sflag, size = 0x4, scoped, tag = 'scoped memory for tile.8']
  %s0 = inlined_call_operand.vmem [shape: f32[8], index: 0, kind: input, shape index: {}]
  %s1 = inlined_call_operand.vmem [shape: f32[4,8], index: 1, kind: output, shape index: {}]
  // Predicated region
  $region2: #{tile.8} parent=0 // pred_check
    _
  $region3: #{tile.8} parent=0 // pred_check_branch
    %3 = sbr.rel (0) target = $region5
  $region4: #{tile.8} parent=0 // pred_region
    _
  $region5: #{tile.8} parent=0 // pred_fallthru
    _
  %v4 = vld [vmem:[%s0] ss:$0 sm:$0xff]
  %5 = vst [vmem:[%s1] sm:$0xf] %v4

// kernel: tile.9
$region0: #{tile.9}
  %s0 = inlined_call_operand.vmem [shape: f32[4,8], index: 0, kind: input, shape index: {}]
  %s1 = inlined_call_operand.vmem [shape: f32[1,32], index: 1, kind: output, shape index: {}]
  $region1: #{tile.9} parent=0
    #allocation0 [shape = 'u8[4096]{0}', space=vmem, size = 0x1000, scoped, tag = 'scoped mem for output reshape']
    #allocation1 [shape = 'u8[4096]{0}', space=vmem, size = 0x1000, scoped, tag = 'scoped mem for input reshape']
    %s3 = sshllo.u32 0, 4
    %v4 = vld [vmem:[%s0] sm:%s3]
    %5 = vst [vmem:[#allocation1] sm:%s3] %v4
    %v6 = vld [vmem:[#allocation1] sm:$0x1]
    %vm7 = vcmask 64512
    %8 = vst.msk [vmem:[#allocation0] sm:$0x1] %vm7, %v6
    %s9 = scalar_lea.vmem [#allocation1], 3
    %v10 = vld [vmem:[%s9] sm:$0x1]
    %11 = vrot.lane.b32.xlu0 %v10, 24
    %v12 = vpop.permute.xlu0 %11
    %vm13 = vcmask 261312
    %14 = vst.msk [vmem:[#allocation0] sm:$0x1] %vm13, %v12
    %s15 = scalar_lea.vmem [#allocation1], 2
    %v16 = vld [vmem:[%s15] sm:$0x1]
    %17 = vrot.lane.b32.xlu0 %v16, 16
    %v18 = vpop.permute.xlu0 %17
    %vm19 = vcmask 195712
    %20 = vst.msk [vmem:[#allocation0] sm:$0x1] %vm19, %v18
    %s21 = scalar_lea.vmem [#allocation1], 1
    %v22 = vld [vmem:[%s21] sm:$0x1]
    %23 = vrot.lane.b32.xlu0 %v22, 8
    %v24 = vpop.permute.xlu0 %23
    %vm25 = vcmask 130112
    %26 = vst.msk [vmem:[#allocation0] sm:$0x1] %vm25, %v24
    %s28 = sshllo.u32 0, 1
    %v30 = vld [vmem:[#allocation0] sm:%s28]
    %s31 = sshllo.u32 0, 1
    %32 = vst [vmem:[%s1] sm:%s31] %v30

// kernel: patch_embedding.1
$region0: #{patch_embedding.1}
  #allocation0 [shape = 'u32[]', space=smem, size = 0x4, offset = 0x4, fixed_abs, tag = 'smem constant byte address 0x4 - core index']
  #allocation1 [shape = 'u32[144,128]{1,0:T(1,128)}', space=vmem, size = 0x12000, scoped, tag = 'internal scratch']
  %s0 = inlined_call_operand.vmem [shape: f32[2,16,28], index: 0, kind: input, shape index: {}]
  %s1 = inlined_call_operand.vmem [shape: f32[28,32], index: 1, kind: input, shape index: {}]
  %s2 = inlined_call_operand.vmem [shape: f32[1,32], index: 2, kind: input, shape index: {}]
  %s3 = inlined_call_operand.vmem [shape: f32[2,4,16,8], index: 3, kind: output, shape index: {}]
  %s4 = sld [smem:[#allocation0]]
  $region45: #{patch_embedding.1} parent=0
    _
  %s6 = ssub.s32 1, %s4
  %s7 = scalar_select 0, %s6, %s4
  loop: start=0, step=1, limit=4
  $region2: #{patch_embedding.1} parent=0 // loop_pre_header
    _
  $region3: #{patch_embedding.1} parent=0 // loop_header
    %s9 = sphi 0, %s13
    %p10 = scmp.ge.s32.totalorder %s9, 4
    %s16 = sphi 0, %s28
    %s17 = sphi 0, %s24
    %s18 = sphi 0, %s16
    %s19 = sphi 0, %s17
    %s20 = sphi 0, %s18
    %s21 = sphi 0, %s19
    %s33 = sphi 0, %s35
    %s36 = sphi 0, %s33
    %s37 = sphi 0, %s36
    %s53 = sphi 0, %s37
    %s57 = sphi 0, %s57
    %s59 = sphi 0, %s57
    %s60 = sphi 0, %s59
    %s74 = sphi 0, %s60
    %s78 = sphi 0, %s78
    %s80 = sphi 0, %s78
    %s81 = sphi 0, %s80
    %s95 = sphi 0, %s81
    %s103 = sphi 0, %s105
    %s106 = sphi 0, %s103
    %s107 = sphi 0, %s106
    %s123 = sphi 0, %s107
  $region4: #{patch_embedding.1} parent=0 // loop_header_branch
    %12 = sbr.rel (%p10) target = $region8
  $region5: #{patch_embedding.1} parent=0 // loop_body
    %s14 = ssub.s32 %s9, 1
    %s15 = ssub.s32 %s9, 2
    %s22 = sadd.s32 1, %s17
    %p23 = scmp.ge.s32.totalorder %s22, 1
    %s24 = scalar_select %p23, 0, %s22
    %s25 = sadd.s32 1, %s16
    %s26 = scalar_select %p23, %s25, %s16
    %p27 = scmp.ge.s32.totalorder %s26, 2
    %s28 = scalar_select %p27, 0, %s26
    %s29 = ssub.s32 %s16, %s28
    %s30 = ssub.s32 %s17, %s24
    %s31 = sor.u32 %s29, %s30
    %p32 = scmp.eq.s32.totalorder %s31, 0
    %s34 = sadd.s32 %s33, 1
    %s35 = scalar_select %p32, %s33, %s34
    %p38 = pneg %p32
    %p39 = scmp.eq.s32.totalorder %s9, 1
    %p40 = por %p38, %p39
    %p41 = scmp.ne.s32.totalorder %s33, %s36
    %p42 = scmp.eq.s32.totalorder %s9, 0
    %p43 = por %p41, %p42
    %p44 = scmp.ne.s32.totalorder %s33, %s36
    %p45 = scmp.eq.s32.totalorder %s14, 1
    %p46 = por %p44, %p45
    %p47 = scmp.ne.s32.totalorder %s36, %s37
    %p48 = scmp.eq.s32.totalorder %s14, 0
    %p49 = por %p47, %p48
    %p50 = scmp.ne.s32.totalorder %s36, %s37
    %p51 = scmp.eq.s32.totalorder %s15, 1
    %p52 = por %p50, %p51
    %p54 = scmp.ne.s32.totalorder %s37, %s53
    %p55 = scmp.eq.s32.totalorder %s15, 0
    %p56 = por %p54, %p55
    %s58 = sadd.s32 %s57, 1
    %p61 = scmp.eq.s32.totalorder %s9, 1
    %p62 = scmp.ne.s32.totalorder %s57, %s59
    %p63 = scmp.eq.s32.totalorder %s9, 0
    %p64 = por %p62, %p63
    %p65 = scmp.ne.s32.totalorder %s57, %s59
    %p66 = scmp.eq.s32.totalorder %s14, 1
    %p67 = por %p65, %p66
    %p68 = scmp.ne.s32.totalorder %s59, %s60
    %p69 = scmp.eq.s32.totalorder %s14, 0
    %p70 = por %p68, %p69
    %p71 = scmp.ne.s32.totalorder %s59, %s60
    %p72 = scmp.eq.s32.totalorder %s15, 1
    %p73 = por %p71, %p72
    %p75 = scmp.ne.s32.totalorder %s60, %s74
    %p76 = scmp.eq.s32.totalorder %s15, 0
    %p77 = por %p75, %p76
    %s79 = sadd.s32 %s78, 1
    %p82 = scmp.eq.s32.totalorder %s9, 1
    %p83 = scmp.ne.s32.totalorder %s78, %s80
    %p84 = scmp.eq.s32.totalorder %s9, 0
    %p85 = por %p83, %p84
    %p86 = scmp.ne.s32.totalorder %s78, %s80
    %p87 = scmp.eq.s32.totalorder %s14, 1
    %p88 = por %p86, %p87
    %p89 = scmp.ne.s32.totalorder %s80, %s81
    %p90 = scmp.eq.s32.totalorder %s14, 0
    %p91 = por %p89, %p90
    %p92 = scmp.ne.s32.totalorder %s80, %s81
    %p93 = scmp.eq.s32.totalorder %s15, 1
    %p94 = por %p92, %p93
    %p96 = scmp.ne.s32.totalorder %s81, %s95
    %p97 = scmp.eq.s32.totalorder %s15, 0
    %p98 = por %p96, %p97
    %s99 = ssub.s32 %s16, %s28
    %s100 = ssub.s32 %s17, %s24
    %s101 = sor.u32 %s99, %s100
    %p102 = scmp.eq.s32.totalorder %s101, 0
    %s104 = sadd.s32 %s103, 1
    %s105 = scalar_select %p102, %s103, %s104
    %p108 = pneg %p102
    %p109 = scmp.eq.s32.totalorder %s9, 1
    %p110 = por %p108, %p109
    %p111 = scmp.ne.s32.totalorder %s103, %s106
    %p112 = scmp.eq.s32.totalorder %s9, 0
    %p113 = por %p111, %p112
    %p114 = scmp.ne.s32.totalorder %s103, %s106
    %p115 = scmp.eq.s32.totalorder %s14, 1
    %p116 = por %p114, %p115
    %p117 = scmp.ne.s32.totalorder %s106, %s107
    %p118 = scmp.eq.s32.totalorder %s14, 0
    %p119 = por %p117, %p118
    %p120 = scmp.ne.s32.totalorder %s106, %s107
    %p121 = scmp.eq.s32.totalorder %s15, 1
    %p122 = por %p120, %p121
    %p124 = scmp.ne.s32.totalorder %s107, %s123
    %p125 = scmp.eq.s32.totalorder %s15, 0
    %p126 = por %p124, %p125
    %p127 = scmp.le.s32.totalorder 1, %s9
    %p128 = scmp.lt.s32.totalorder %s9, 3
    %p129 = pnand %p127, %p128
    %p130 = pneg %p129
    // Predicated region
    $region9: #{patch_embedding.1} parent=5 // pred_check
      _
    $region10: #{patch_embedding.1} parent=5 // pred_check_branch
      %132 = sbr.rel (%p129) target = $region12
    $region11: #{patch_embedding.1} parent=5 // pred_region
      %s133 = ssub.s32 %s9, 1
      // Predicated region
      $region13: #{patch_embedding.1} parent=11 // pred_check
        %p134 = pneg %p70
      $region14: #{patch_embedding.1} parent=11 // pred_check_branch
        %136 = sbr.rel (%p134) target = $region16
      $region15: #{patch_embedding.1} parent=11 // pred_region
        _
      $region16: #{patch_embedding.1} parent=11 // pred_fallthru
        _
      // Predicated region
      $region17: #{patch_embedding.1} parent=11 // pred_check
        %p137 = pneg %p91
      $region18: #{patch_embedding.1} parent=11 // pred_check_branch
        %139 = sbr.rel (%p137) target = $region20
      $region19: #{patch_embedding.1} parent=11 // pred_region
        _
      $region20: #{patch_embedding.1} parent=11 // pred_fallthru
        _
    $region12: #{patch_embedding.1} parent=5 // pred_fallthru
      _
    %p140 = scmp.lt.s32.totalorder %s9, 2
    // Predicated region
    $region21: #{patch_embedding.1} parent=5 // pred_check
      %p141 = pneg %p140
    $region22: #{patch_embedding.1} parent=5 // pred_check_branch
      %143 = sbr.rel (%p141) target = $region24
    $region23: #{patch_embedding.1} parent=5 // pred_region
      // Predicated region
      $region25: #{patch_embedding.1} parent=23 // pred_check
        %p144 = pneg %p43
      $region26: #{patch_embedding.1} parent=23 // pred_check_branch
        %146 = sbr.rel (%p144) target = $region28
      $region27: #{patch_embedding.1} parent=23 // pred_region
        %s147 = smul.u32 2, %s17
        %p148 = scmp.lt.s32.totalorder %s16, 1
        %s149 = scalar_select %p148, %s16, 1
        %p150 = scmp.lt.s32.totalorder %s147, 1
        %s151 = scalar_select %p150, %s147, 1
        %s152 = smul.addr %s149, 2
        %s153 = sadd.s32 %s151, %s152
        %s154 = smul.addr %s153, 8
        %s155 = scalar_lea.vmem %s0, %s154
        %s156 = smul.u32 2, %s17
      $region28: #{patch_embedding.1} parent=23 // pred_fallthru
        _
    $region24: #{patch_embedding.1} parent=5 // pred_fallthru
      _
    %p157 = scmp.le.s32.totalorder 1, %s9
    %p158 = scmp.lt.s32.totalorder %s9, 3
    %p159 = pnand %p157, %p158
    %p160 = pneg %p159
    // Predicated region
    $region29: #{patch_embedding.1} parent=5 // pred_check
      _
    $region30: #{patch_embedding.1} parent=5 // pred_check_branch
      %162 = sbr.rel (%p159) target = $region32
    $region31: #{patch_embedding.1} parent=5 // pred_region
      %s163 = ssub.s32 %s9, 1
      %s164 = smul.u32 2, %s19
      %p165 = scmp.lt.s32.totalorder %s18, 1
      %s166 = scalar_select %p165, %s18, 1
      %p167 = scmp.lt.s32.totalorder %s164, 1
      %s168 = scalar_select %p167, %s164, 1
      %s169 = smul.addr %s166, 2
      %s170 = sadd.s32 %s168, %s169
      %s171 = smul.addr %s170, 8
      %s172 = scalar_lea.vmem %s0, %s171
      %p173 = pneg %p49
      %p174 = pneg %p46
      %p175 = pneg %p70
      %p176 = pneg %p67
      %p177 = pneg %p91
      %p178 = pneg %p88
      %p179 = pneg %p119
      %p180 = pneg %p116
      %s181 = smul.u32 2, %s19
      %p182 = scmp.lt.s32.totalorder %s18, 1
      %s183 = scalar_select %p182, %s18, 1
      %p184 = scmp.lt.s32.totalorder %s181, 1
      %s185 = scalar_select %p184, %s181, 1
      %s186 = smul.addr %s183, 8
      %s187 = sadd.s32 %s185, %s186
      %s188 = smul.addr %s187, 8
      %s189 = scalar_lea.vmem %s3, %s188
      %s190 = smul.u32 2, %s19
      %p191 = scmp.lt.s32.totalorder %s18, 1
      %s192 = scalar_select %p191, %s18, 1
      %p193 = scmp.lt.s32.totalorder %s190, 1
      %s194 = scalar_select %p193, %s190, 1
      %s195 = smul.addr %s192, 2
      %s196 = sadd.s32 %s194, %s195
      %s197 = smul.addr %s196, 8
      %s198 = scalar_lea.vmem %s0, %s197
      %s199 = smul.u32 2, %s19
      %s200 = smul.u32 2, %s19
      %p201 = scmp.lt.s32.totalorder %s18, 1
      %s202 = scalar_select %p201, %s18, 1
      %p203 = scmp.lt.s32.totalorder %s200, 1
      %s204 = scalar_select %p203, %s200, 1
      %s205 = smul.addr %s202, 8
      %s206 = sadd.s32 %s204, %s205
      %s207 = smul.addr %s206, 8
      %s208 = scalar_lea.vmem %s3, %s207
      %s209 = smul.u32 2, %s19
      %v210 = vld [vmem:[%s198] sm:$0xff]
      %v211 = vld [vmem:[%s198 + $0x8] sm:$0xff]
      %v212 = vld [vmem:[%s1] sm:$0xff]
      %v213 = vld [vmem:[%s1 + $0x8] sm:$0xff]
      %v214 = vld [vmem:[%s1 + $0x10] sm:$0xff]
      %v215 = vld [vmem:[%s1 + $0x18] sm:$0xf]
      %v216 = vld [vmem:[%s2] sm:$0x1]
      %v218 = vlaneseq
      %v219 = vshrl.u32 %v218, 7
      %v220 = vsub.s32 0, %v219
      %v221 = vrot.slane %v216, %v220
      %vm223 = vcmask 228352
      %v225 = vsel %vm223, %v210, 0
      %v228 = vsel %vm223, %v211, 0
      %vm230 = vcmask 1043456
      %v232 = vsel %vm230, %v215, 0
      %234 = vmatprep.subr.mxu0 0.0
      %235 = vmatpush1.msra.mxu0 %v212
      %236 = vmatprep.subr.mxu0 0.0
      %237 = vmatpush1.msra.mxu0 %v213
      %238 = vmatprep.subr.mxu0 0.0
      %239 = vmatpush1.msra.mxu0 %v214
      %240 = vmatprep.subr.mxu0 0.0
      %241 = vmatpush1.msra.mxu0 %v232
      %242 = vmatprep.subr.mxu0 0.0
      %243 = vmatpush1.msra.mxu0 0.0
      %244 = vmatprep.subr.mxu0 0.0
      %245 = vmatpush1.msra.mxu0 0.0
      %246 = vmatprep.subr.mxu0 0.0
      %247 = vmatpush1.msra.mxu0 0.0
      %248 = vmatprep.subr.mxu0 0.0
      %249 = vmatpush1.msra.mxu0 0.0
      %250 = vmatprep.subr.mxu0 0.0
      %251 = vmatpush1.msra.mxu0 0.0
      %252 = vmatprep.subr.mxu0 0.0
      %253 = vmatpush1.msra.mxu0 0.0
      %254 = vmatprep.subr.mxu0 0.0
      %255 = vmatpush1.msra.mxu0 0.0
      %256 = vmatprep.subr.mxu0 0.0
      %257 = vmatpush1.msra.mxu0 0.0
      %258 = vmatprep.subr.mxu0 0.0
      %259 = vmatpush1.msra.mxu0 0.0
      %260 = vmatprep.subr.mxu0 0.0
      %261 = vmatpush1.msra.mxu0 0.0
      %262 = vmatprep.subr.mxu0 0.0
      %263 = vmatpush1.msra.mxu0 0.0
      %264 = vmatprep.subr.mxu0 0.0
      %265 = vmatpush1.msra.mxu0 0.0
      %266 = vmatprep.subr.mxu0 0.0
      %267 = vmatpush1.msra.mxu0 0.0
      %268 = vmatprep.subr.mxu0 0.0
      %269 = vmatpush1.msra.mxu0 0.0
      %270 = vmatprep.subr.mxu0 0.0
      %271 = vmatpush1.msra.mxu0 0.0
      %272 = vmatprep.subr.mxu0 0.0
      %273 = vmatpush1.msra.mxu0 0.0
      %274 = vmatprep.subr.mxu0 0.0
      %275 = vmatpush1.msra.mxu0 0.0
      %276 = vmatprep.subr.mxu0 0.0
      %277 = vmatpush1.msra.mxu0 0.0
      %278 = vmatprep.subr.mxu0 0.0
      %279 = vmatpush1.msra.mxu0 0.0
      %280 = vmatprep.subr.mxu0 0.0
      %281 = vmatpush1.msra.mxu0 0.0
      %282 = vmatprep.subr.mxu0 0.0
      %283 = vmatpush1.msra.mxu0 0.0
      %284 = vmatprep.subr.mxu0 0.0
      %285 = vmatpush1.msra.mxu0 0.0
      %286 = vmatprep.subr.mxu0 0.0
      %287 = vmatpush1.msra.mxu0 0.0
      %288 = vmatprep.subr.mxu0 0.0
      %289 = vmatpush1.msra.mxu0 0.0
      %290 = vmatprep.subr.mxu0 0.0
      %291 = vmatpush1.msra.mxu0 0.0
      %292 = vmatprep.subr.mxu0 0.0
      %293 = vmatpush1.msra.mxu0 0.0
      %294 = vmatprep.subr.mxu0 0.0
      %295 = vmatpush1.msra.mxu0 0.0
      %296 = vmatprep.subr.mxu0 0.0
      %297 = vmatpush1.msra.mxu0 0.0
      %298 = vmatprep.mubr.f32.mxu0 0.0
      %299 = vmatmul.mubr.f32.gmra.mrb[0].mxu0 %v225
      %v300 = vpop.f32.mrb[0].mxu0
      %v301 = vadd.f32 %v221, %v300
      %v302 = vpop.f32.mrb[0].mxu0
      %303 = vmatprep.mubr.f32.mxu0 0.0
      %304 = vmatmul.mubr.f32.gmra.mrb[0].mxu0 %v228
      %v305 = vpop.f32.mrb[0].mxu0
      %v306 = vadd.f32 %v221, %v305
      %v307 = vpop.f32.mrb[0].mxu0
      %308 = vdwg.mxu0
      %vm309 = vcmask 64512
      %310 = vst.msk [vmem:[%s208] sm:$0xff] %vm309, %v301
      %311 = vst.msk [vmem:[%s208 + $0x8] sm:$0xff] %vm309, %v306
      %314 = vrot.lane.b32.xlu0 %v301, 120
      %v315 = vpop.permute.xlu0 %314
      %316 = vrot.lane.b32.xlu0 %v306, 120
      %v317 = vpop.permute.xlu0 %316
      %s320 = scalar_lea.vmem %s208, 16
      %321 = vst.msk [vmem:[%s320] sm:$0xff] %vm309, %v315
      %322 = vst.msk [vmem:[%s320 + $0x8] sm:$0xff] %vm309, %v317
      %323 = vrot.lane.b32.xlu0 %v301, 112
      %v324 = vpop.permute.xlu0 %323
      %325 = vrot.lane.b32.xlu0 %v306, 112
      %v326 = vpop.permute.xlu0 %325
      %s329 = scalar_lea.vmem %s208, 32
      %330 = vst.msk [vmem:[%s329] sm:$0xff] %vm309, %v324
      %331 = vst.msk [vmem:[%s329 + $0x8] sm:$0xff] %vm309, %v326
      %332 = vrot.lane.b32.xlu0 %v301, 104
      %v333 = vpop.permute.xlu0 %332
      %334 = vrot.lane.b32.xlu0 %v306, 104
      %v335 = vpop.permute.xlu0 %334
      %s338 = scalar_lea.vmem %s208, 48
      %339 = vst.msk [vmem:[%s338] sm:$0xff] %vm309, %v333
      %340 = vst.msk [vmem:[%s338 + $0x8] sm:$0xff] %vm309, %v335
      %s341 = smul.u32 2, %s19
      %p342 = scmp.lt.s32.totalorder %s18, 1
      %s343 = scalar_select %p342, %s18, 1
      %p344 = scmp.lt.s32.totalorder %s341, 1
      %s345 = scalar_select %p344, %s341, 1
      %s346 = smul.addr %s343, 8
      %s347 = sadd.s32 %s345, %s346
      %s348 = smul.addr %s347, 8
      %s349 = scalar_lea.vmem %s3, %s348
      // Predicated region
      $region33: #{patch_embedding.1} parent=31 // pred_check
        %p350 = pneg %p116
      $region34: #{patch_embedding.1} parent=31 // pred_check_branch
        %352 = sbr.rel (%p350) target = $region36
      $region35: #{patch_embedding.1} parent=31 // pred_region
        %s353 = smul.u32 2, %s19
      $region36: #{patch_embedding.1} parent=31 // pred_fallthru
        _
    $region32: #{patch_embedding.1} parent=5 // pred_fallthru
      _
    %p354 = scmp.le.s32.totalorder 2, %s9
    // Predicated region
    $region37: #{patch_embedding.1} parent=5 // pred_check
      %p355 = pneg %p354
    $region38: #{patch_embedding.1} parent=5 // pred_check_branch
      %357 = sbr.rel (%p355) target = $region40
    $region39: #{patch_embedding.1} parent=5 // pred_region
      %s358 = ssub.s32 %s9, 2
      // Predicated region
      $region41: #{patch_embedding.1} parent=39 // pred_check
        %p359 = pneg %p122
      $region42: #{patch_embedding.1} parent=39 // pred_check_branch
        %361 = sbr.rel (%p359) target = $region44
      $region43: #{patch_embedding.1} parent=39 // pred_region
        %s362 = smul.u32 2, %s21
        %p363 = scmp.lt.s32.totalorder %s20, 1
        %s364 = scalar_select %p363, %s20, 1
        %p365 = scmp.lt.s32.totalorder %s362, 1
        %s366 = scalar_select %p365, %s362, 1
        %s367 = smul.addr %s364, 8
        %s368 = sadd.s32 %s366, %s367
        %s369 = smul.addr %s368, 8
        %s370 = scalar_lea.vmem %s3, %s369
      $region44: #{patch_embedding.1} parent=39 // pred_fallthru
        _
    $region40: #{patch_embedding.1} parent=5 // pred_fallthru
      _
  $region6: #{patch_embedding.1} parent=0 // loop_footer
    %s13 = sadd.s32 1, %s9
  $region7: #{patch_embedding.1} parent=0 // loop_footer_branch
    %8 = sbr.rel target = $region3
  $region8: #{patch_embedding.1} parent=0 // loop_exit
    _

</llo_original>
